<compile_context>
chip_gen: v6e
topology: v6e:2x2x1
jax: 0.10.0
libtpu: 0.0.40
codegen_flags: <defaults>
</compile_context>

<pallas_src>
import functools

import jax
import jax.numpy as jnp
from jax.experimental import pallas as pl
from jax.experimental.pallas import tpu as pltpu

EPS = 1e-8
_LANE = 128


def _round_up(x, m):
    return ((x + m - 1) // m) * m


def _sublane_align(dtype):
    # f32 -> 8, bf16/f16 -> 16, int8/fp8 -> 32 (sub-32-bit packs along sublanes).
    itemsize = max(jnp.dtype(dtype).itemsize, 1)
    return 8 * max(1, 4 // itemsize)


@functools.lru_cache(maxsize=1)
def _vmem_budget_bytes():
    cap = 64 * 1024 * 1024                       # safe default = v7x per-TC VMEM
    try:
        info = pltpu.get_tpu_info()
        cap = int(getattr(info, "vmem_capacity_bytes", cap))
    except Exception:
        pass
    # Leave headroom for compiler scratch; cap well below physical VMEM.
    return min(int(cap * 3 // 4), 96 * 1024 * 1024)


def _choose_tile(size, align, cap, slack=1.10):
    """Pick a tile (multiple of `align`, <= cap) that keeps padding waste small."""
    size_al = _round_up(size, align)
    if size_al <= cap:
        return size_al                           # whole dim in one tile, no waste
    cands = set(range(_LANE, cap + 1, _LANE))    # lane-friendly tiles
    for n in range(2, 17):                       # near-even splits (tiny padding)
        t = _round_up(-(-size_al // n), align)
        if align <= t <= cap:
            cands.add(t)
    limit = int(size_al * slack)
    for t in sorted(cands, reverse=True):        # largest tile within waste cap
        if _round_up(size, t) <= limit:
            return t
    return min(cands, key=lambda t: (_round_up(size, t), -t))


# --------------------------- hoisted row L2 norms ---------------------------

def _row_norm_kernel(x_ref, out_ref):
    k = pl.program_id(1)

    @pl.when(k == 0)
    def _():
        out_ref[...] = jnp.zeros_like(out_ref)

    x = x_ref[...].astype(jnp.float32)           # norm math in f32
    out_ref[...] += jnp.sum(x * x, axis=-1, keepdims=True)

    @pl.when(k == pl.num_programs(1) - 1)
    def _():
        out_ref[...] = jnp.sqrt(out_ref[...])


def _row_norms(x_pad, tb, tk, vmem_limit):
    """L2 norm of each row of x_pad (B_p, D_p) -> (B_p, 1) f32."""
    bp, dp = x_pad.shape
    return pl.pallas_call(
        _row_norm_kernel,
        out_shape=jax.ShapeDtypeStruct((bp, 1), jnp.float32),
        grid=(bp // tb, dp // tk),
        in_specs=[pl.BlockSpec((tb, tk), lambda i, k: (i, k))],
        out_specs=pl.BlockSpec((tb, 1), lambda i, k: (i, 0)),
        compiler_params=pltpu.CompilerParams(
            dimension_semantics=("parallel", "arbitrary"),
            vmem_limit_bytes=vmem_limit,
        ),
    )(x_pad)


# ------------------------- pairwise cosine similarity -----------------------

def _hvsa_kernel(img_ref, txt_ref, w1_ref, w2_ref, out_ref):
    k = pl.program_id(2)

    @pl.when(k == 0)
    def _():
        out_ref[...] = jnp.zeros_like(out_ref)

    # Contract on the shared feature axis (no transpose); native-dtype MXU
    # inputs, f32 accumulation held directly in the resident output block.
    out_ref[...] += jax.lax.dot_general(
        img_ref[...], txt_ref[...],
        dimension_numbers=(((1,), (1,)), ((), ())),
        preferred_element_type=jnp.float32,
    )

    @pl.when(k == pl.num_programs(2) - 1)
    def _():
        # (TM, 1) * (1, TN) -> (TM, TN); clamp matches torch .clamp(min=eps).
        denom = jnp.maximum(w1_ref[...] * w2_ref[...], EPS)
        inv = pl.reciprocal(denom, approx=True)   # EUP fast path
        inv = inv * (2.0 - denom * inv)           # one Newton step -> ~f32 exact
        out_ref[...] = out_ref[...] * inv


@jax.jit
def hvsa_forward(img_feature, text_feature, text_lens=None):
    """Pairwise cosine similarity matrix, shape (B_img, B_text)."""
    del text_lens  # unused in the reference forward
    common_dt = jnp.promote_types(img_feature.dtype, text_feature.dtype)
    img_feature = img_feature.astype(common_dt)
    text_feature = text_feature.astype(common_dt)

    bi, d = img_feature.shape
    bt, d2 = text_feature.shape
    assert d == d2, "feature dims must match"

    m_align = _sublane_align(common_dt)
    in_bytes = jnp.dtype(common_dt).itemsize
    budget = _vmem_budget_bytes()

    # Large, padding-aware tiles: whole dim if it fits under the cap, otherwise
    # the biggest tile whose padding waste stays within ~10%.
    tm = _choose_tile(bi, m_align, 1024)
    tn = _choose_tile(bt, _LANE, 1024)
    tk = _choose_tile(d, _LANE, 2048)

    def usage(tm_, tn_, tk_):
        return (2 * (tm_ + tn_) * tk_ * in_bytes   # double-buffered input tiles
                + 2 * tm_ * tn_ * 4                # resident f32 output tile
                + 4 * (tm_ + tn_) * 4)             # norm vectors (tiny)

    # Shrink tiles until the working set fits the per-generation VMEM budget.
    while usage(tm, tn, tk) > budget:
        if tk > 512:
            tk = _round_up(tk // 2, _LANE)
        elif tn >= tm and tn > 256:
            tn = _round_up(tn // 2, _LANE)
        elif tm > 256:
            tm = _round_up(tm // 2, m_align)
        else:
            break

    bi_p = _round_up(bi, tm)
    bt_p = _round_up(bt, tn)
    d_p = _round_up(d, tk)

    # v7x has 2 TensorCores: keep the "parallel" (i, j) grid >= 2 tiles for
    # non-trivial problems by splitting the batch (sublane) axis; it costs at
    # most a few rows of padding and one extra grid step on v5e/v6e.
    if bi_p // tm == 1 and bt_p // tn == 1 and bi_p * bt_p >= 128 * 128:
        if bi_p >= 2 * m_align:
            tm = _round_up(-(-bi_p // 2), m_align)
            bi_p = _round_up(bi, tm)
        elif bt_p >= 2 * _LANE:
            tn = _round_up(-(-bt_p // 2), _LANE)
            bt_p = _round_up(bt, tn)

    img_p = img_feature
    if (bi_p, d_p) != (bi, d):
        img_p = jnp.pad(img_feature, ((0, bi_p - bi), (0, d_p - d)))
    txt_p = text_feature
    if (bt_p, d_p) != (bt, d):
        txt_p = jnp.pad(text_feature, ((0, bt_p - bt), (0, d_p - d)))

    # Hoisted norms: computed once, not once per pairwise tile.  Text norms are
    # reshaped lane-major so the main kernel never transposes them.
    w1 = _row_norms(img_p, tm, tk, budget)                    # (bi_p, 1)
    w2 = _row_norms(txt_p, tn, tk, budget).reshape(1, bt_p)   # (1, bt_p)

    grid = (bi_p // tm, bt_p // tn, d_p // tk)

    out = pl.pallas_call(
        _hvsa_kernel,
        out_shape=jax.ShapeDtypeStruct((bi_p, bt_p), jnp.float32),
        grid=grid,
        in_specs=[
            pl.BlockSpec((tm, tk), lambda i, j, k: (i, k)),   # img tile
            pl.BlockSpec((tn, tk), lambda i, j, k: (j, k)),   # txt tile
            pl.BlockSpec((tm, 1), lambda i, j, k: (i, 0)),    # ||img|| column
            pl.BlockSpec((1, tn), lambda i, j, k: (0, j)),    # ||txt|| row
        ],
        out_specs=pl.BlockSpec((tm, tn), lambda i, j, k: (i, j)),
        compiler_params=pltpu.CompilerParams(
            dimension_semantics=("parallel", "parallel", "arbitrary"),
            vmem_limit_bytes=budget,
        ),
    )(img_p, txt_p, w1, w2)

    out = out[:bi, :bt]
    # torch .squeeze(): only removes size-1 dims; no-op for batch > 1.
    return jnp.squeeze(out)


# TODO(synk): self.Eiters training-iteration counter is host-side Python state
# with no kernel equivalent; omitted.


def _reference(img, txt):
    w12 = jnp.matmul(img, txt.T, precision=jax.lax.Precision.HIGHEST)
    w1 = jnp.linalg.norm(img, axis=-1, keepdims=True)
    w2 = jnp.linalg.norm(txt, axis=-1, keepdims=True)
    return w12 / jnp.maximum(w1 * w2.T, EPS)


if __name__ == "__main__":
    key = jax.random.PRNGKey(0)
    k_img, k_txt, k_img2, k_txt2 = jax.random.split(key, 4)

    # Small shapes consistent with the module's forward.
    B_IMG, B_TXT, D = 8, 8, 32
    img_feature = jax.random.normal(k_img, (B_IMG, D), dtype=jnp.float32)
    text_feature = jax.random.normal(k_txt, (B_TXT, D), dtype=jnp.float32)
    text_lens = jnp.full((B_TXT,), D, dtype=jnp.int32)  # unused, as in PyTorch

    dual_sim = hvsa_forward(img_feature, text_feature, text_lens)
    jax.block_until_ready(dual_sim)
    ref = _reference(img_feature, text_feature)
    assert dual_sim.shape == (B_IMG, B_TXT)
    assert jnp.allclose(dual_sim, ref, atol=1e-5, rtol=1e-5)

    # Second check: uneven shapes exercise padding-aware tiles, the megacore
    # split (grid_i == 2) and the whole-dim K tile.
    BI2, BT2, D2 = 264, 300, 640
    img2 = jax.random.normal(k_img2, (BI2, D2), dtype=jnp.float32)
    txt2 = jax.random.normal(k_txt2, (BT2, D2), dtype=jnp.float32)
    sim2 = hvsa_forward(img2, txt2, None)
    jax.block_until_ready(sim2)
    ref2 = _reference(img2, txt2)
    assert sim2.shape == (BI2, BT2)
    assert jnp.allclose(sim2, ref2, atol=1e-3, rtol=1e-3)

    print("KERNEL_OK")
</pallas_src>

<mosaic_0001>
module attributes {stable_mosaic.version = 11 : i64} {
  func.func @_row_norm_kernel(%arg0: i32, %arg1: i32, %arg2: memref<128x128xf32, #tpu.memory_space<vmem>>, %arg3: memref<128x1xf32, #tpu.memory_space<vmem>>) attributes {dimension_semantics = [#tpu.dimension_semantics<parallel>, #tpu.dimension_semantics<arbitrary>], iteration_bounds = array<i64: 1, 1>, scalar_prefetch = 0 : i64, scratch_operands = 0 : i64, tpu.core_type = #tpu.core_type<tc>, window_params = [{transform_indices = @transform_0, window_bounds = array<i64: 128, 128>}, {transform_indices = @transform_1, window_bounds = array<i64: 128, 1>}]} {
    %c0_i32 = arith.constant 0 : i32
    %0 = arith.cmpi eq, %arg1, %c0_i32 : i32
    %1 = arith.extui %0 : i1 to i32
    %c0_i32_0 = arith.constant 0 : i32
    %2 = arith.cmpi ne, %1, %c0_i32_0 : i32
    scf.if %2 {
      %cst_8 = arith.constant 0.000000e+00 : f32
      %13 = vector.broadcast %cst_8 : f32 to vector<128x1xf32>
      %c0_9 = arith.constant 0 : index
      %c0_10 = arith.constant 0 : index
      %14 = vector.load %arg3[%c0_9, %c0_10] : memref<128x1xf32, #tpu.memory_space<vmem>>, vector<128x1xf32>
      tpu.vector_store %arg3[%c0_9, %c0_10], %13 {strides = array<i32>} : memref<128x1xf32, #tpu.memory_space<vmem>>, vector<128x1xf32>,
    } else {
    }
    %c0 = arith.constant 0 : index
    %c0_1 = arith.constant 0 : index
    %3 = vector.load %arg2[%c0, %c0_1] : memref<128x128xf32, #tpu.memory_space<vmem>>, vector<128x128xf32>
    %c0_2 = arith.constant 0 : index
    %c0_3 = arith.constant 0 : index
    %4 = vector.load %arg3[%c0_2, %c0_3] : memref<128x1xf32, #tpu.memory_space<vmem>>, vector<128x1xf32>
    %5 = arith.mulf %3, %3 : vector<128x128xf32>
    %cst = arith.constant dense<0.000000e+00> : vector<128xf32>
    %6 = vector.multi_reduction <add>, %5, %cst [1] : vector<128x128xf32> to vector<128xf32>
    %7 = vector.shape_cast %6 : vector<128xf32> to vector<128x1xf32>
    %8 = arith.addf %4, %7 : vector<128x1xf32>
    %c0_4 = arith.constant 0 : index
    %c0_5 = arith.constant 0 : index
    %9 = vector.load %arg3[%c0_4, %c0_5] : memref<128x1xf32, #tpu.memory_space<vmem>>, vector<128x1xf32>
    tpu.vector_store %arg3[%c0_4, %c0_5], %8 {strides = array<i32>} : memref<128x1xf32, #tpu.memory_space<vmem>>, vector<128x1xf32>,
    %c0_i32_6 = arith.constant 0 : i32
    %10 = arith.cmpi eq, %arg1, %c0_i32_6 : i32
    %11 = arith.extui %10 : i1 to i32
    %c0_i32_7 = arith.constant 0 : i32
    %12 = arith.cmpi ne, %11, %c0_i32_7 : i32
    scf.if %12 {
      %c0_8 = arith.constant 0 : index
      %c0_9 = arith.constant 0 : index
      %13 = vector.load %arg3[%c0_8, %c0_9] : memref<128x1xf32, #tpu.memory_space<vmem>>, vector<128x1xf32>
      %14 = math.sqrt %13 : vector<128x1xf32>
      %c0_10 = arith.constant 0 : index
      %c0_11 = arith.constant 0 : index
      %15 = vector.load %arg3[%c0_10, %c0_11] : memref<128x1xf32, #tpu.memory_space<vmem>>, vector<128x1xf32>
      tpu.vector_store %arg3[%c0_10, %c0_11], %14 {strides = array<i32>} : memref<128x1xf32, #tpu.memory_space<vmem>>, vector<128x1xf32>,
    } else {
    }
    return
  }
  func.func @transform_0(%arg0: i32, %arg1: i32) -> (i32, i32) {
    %c0_i32 = arith.constant 0 : i32
    return %arg0, %arg1 : i32, i32
  }
  func.func @transform_1(%arg0: i32, %arg1: i32) -> (i32, i32) {
    %c0_i32 = arith.constant 0 : i32
    %c0_i32_0 = arith.constant 0 : i32
    return %arg0, %c0_i32 : i32, i32
  }
}

module attributes {stable_mosaic.version = 11 : i64} {
  func.func @_hvsa_kernel(%arg0: i32, %arg1: i32, %arg2: i32, %arg3: memref<8x128xf32, #tpu.memory_space<vmem>>, %arg4: memref<128x128xf32, #tpu.memory_space<vmem>>, %arg5: memref<8x1xf32, #tpu.memory_space<vmem>>, %arg6: memref<1x128xf32, #tpu.memory_space<vmem>>, %arg7: memref<8x128xf32, #tpu.memory_space<vmem>>) attributes {dimension_semantics = [#tpu.dimension_semantics<parallel>, #tpu.dimension_semantics<parallel>, #tpu.dimension_semantics<arbitrary>], iteration_bounds = array<i64: 1, 1, 1>, scalar_prefetch = 0 : i64, scratch_operands = 0 : i64, tpu.core_type = #tpu.core_type<tc>, window_params = [{transform_indices = @transform_0, window_bounds = array<i64: 8, 128>}, {transform_indices = @transform_1, window_bounds = array<i64: 128, 128>}, {transform_indices = @transform_2, window_bounds = array<i64: 8, 1>}, {transform_indices = @transform_3, window_bounds = array<i64: 1, 128>}, {transform_indices = @transform_4, window_bounds = array<i64: 8, 128>}]} {
    %c0_i32 = arith.constant 0 : i32
    %0 = arith.cmpi eq, %arg2, %c0_i32 : i32
    %1 = arith.extui %0 : i1 to i32
    %c0_i32_0 = arith.constant 0 : i32
    %2 = arith.cmpi ne, %1, %c0_i32_0 : i32
    scf.if %2 {
      %cst_10 = arith.constant 0.000000e+00 : f32
      %12 = vector.broadcast %cst_10 : f32 to vector<8x128xf32>
      %c0_11 = arith.constant 0 : index
      %c0_12 = arith.constant 0 : index
      %13 = vector.load %arg7[%c0_11, %c0_12] : memref<8x128xf32, #tpu.memory_space<vmem>>, vector<8x128xf32>
      tpu.vector_store %arg7[%c0_11, %c0_12], %12 {strides = array<i32>} : memref<8x128xf32, #tpu.memory_space<vmem>>, vector<8x128xf32>,
    } else {
    }
    %c0 = arith.constant 0 : index
    %c0_1 = arith.constant 0 : index
    %3 = vector.load %arg7[%c0, %c0_1] : memref<8x128xf32, #tpu.memory_space<vmem>>, vector<8x128xf32>
    %c0_2 = arith.constant 0 : index
    %c0_3 = arith.constant 0 : index
    %4 = vector.load %arg3[%c0_2, %c0_3] : memref<8x128xf32, #tpu.memory_space<vmem>>, vector<8x128xf32>
    %c0_4 = arith.constant 0 : index
    %c0_5 = arith.constant 0 : index
    %5 = vector.load %arg4[%c0_4, %c0_5] : memref<128x128xf32, #tpu.memory_space<vmem>>, vector<128x128xf32>
    %cst = arith.constant dense<0.000000e+00> : vector<8x128xf32>
    %6 = tpu.matmul %4, %5, %cst {dimension_numbers = #tpu.dot_dimension_numbers<[1], [1], [0], [0], [0, 0, 1, 0], [], []>} : vector<8x128xf32>, vector<128x128xf32>, vector<8x128xf32> -> vector<8x128xf32>
    %7 = arith.addf %3, %6 : vector<8x128xf32>
    %c0_6 = arith.constant 0 : index
    %c0_7 = arith.constant 0 : index
    %8 = vector.load %arg7[%c0_6, %c0_7] : memref<8x128xf32, #tpu.memory_space<vmem>>, vector<8x128xf32>
    tpu.vector_store %arg7[%c0_6, %c0_7], %7 {strides = array<i32>} : memref<8x128xf32, #tpu.memory_space<vmem>>, vector<8x128xf32>,
    %c0_i32_8 = arith.constant 0 : i32
    %9 = arith.cmpi eq, %arg2, %c0_i32_8 : i32
    %10 = arith.extui %9 : i1 to i32
    %c0_i32_9 = arith.constant 0 : i32
    %11 = arith.cmpi ne, %10, %c0_i32_9 : i32
    scf.if %11 {
      %c0_10 = arith.constant 0 : index
      %c0_11 = arith.constant 0 : index
      %12 = vector.load %arg5[%c0_10, %c0_11] : memref<8x1xf32, #tpu.memory_space<vmem>>, vector<8x1xf32>
      %c0_12 = arith.constant 0 : index
      %c0_13 = arith.constant 0 : index
      %13 = vector.load %arg6[%c0_12, %c0_13] : memref<1x128xf32, #tpu.memory_space<vmem>>, vector<1x128xf32>
      %14 = vector.broadcast %12 : vector<8x1xf32> to vector<8x128xf32>
      %15 = vector.broadcast %13 : vector<1x128xf32> to vector<8x128xf32>
      %16 = arith.mulf %14, %15 : vector<8x128xf32>
      %cst_14 = arith.constant 9.99999993E-9 : f32
      %17 = vector.broadcast %cst_14 : f32 to vector<8x128xf32>
      %18 = arith.maximumf %16, %17 : vector<8x128xf32>
      %19 = tpu.reciprocal %18 {approx = true} : vector<8x128xf32> -> vector<8x128xf32>
      %20 = arith.mulf %18, %19 : vector<8x128xf32>
      %cst_15 = arith.constant 2.000000e+00 : f32
      %21 = vector.broadcast %cst_15 : f32 to vector<8x128xf32>
      %22 = arith.subf %21, %20 : vector<8x128xf32>
      %23 = arith.mulf %19, %22 : vector<8x128xf32>
      %c0_16 = arith.constant 0 : index
      %c0_17 = arith.constant 0 : index
      %24 = vector.load %arg7[%c0_16, %c0_17] : memref<8x128xf32, #tpu.memory_space<vmem>>, vector<8x128xf32>
      %25 = arith.mulf %24, %23 : vector<8x128xf32>
      %c0_18 = arith.constant 0 : index
      %c0_19 = arith.constant 0 : index
      %26 = vector.load %arg7[%c0_18, %c0_19] : memref<8x128xf32, #tpu.memory_space<vmem>>, vector<8x128xf32>
      tpu.vector_store %arg7[%c0_18, %c0_19], %25 {strides = array<i32>} : memref<8x128xf32, #tpu.memory_space<vmem>>, vector<8x128xf32>,
    } else {
    }
    return
  }
  func.func @transform_0(%arg0: i32, %arg1: i32, %arg2: i32) -> (i32, i32) {
    %c0_i32 = arith.constant 0 : i32
    return %arg0, %arg2 : i32, i32
  }
  func.func @transform_1(%arg0: i32, %arg1: i32, %arg2: i32) -> (i32, i32) {
    %c0_i32 = arith.constant 0 : i32
    return %arg1, %arg2 : i32, i32
  }
  func.func @transform_2(%arg0: i32, %arg1: i32, %arg2: i32) -> (i32, i32) {
    %c0_i32 = arith.constant 0 : i32
    %c0_i32_0 = arith.constant 0 : i32
    return %arg0, %c0_i32 : i32, i32
  }
  func.func @transform_3(%arg0: i32, %arg1: i32, %arg2: i32) -> (i32, i32) {
    %c0_i32 = arith.constant 0 : i32
    %c0_i32_0 = arith.constant 0 : i32
    return %c0_i32, %arg1 : i32, i32
  }
  func.func @transform_4(%arg0: i32, %arg1: i32, %arg2: i32) -> (i32, i32) {
    %c0_i32 = arith.constant 0 : i32
    return %arg0, %arg1 : i32, i32
  }
}

module attributes {stable_mosaic.version = 11 : i64} {
  func.func @_row_norm_kernel(%arg0: i32, %arg1: i32, %arg2: memref<8x128xf32, #tpu.memory_space<vmem>>, %arg3: memref<8x1xf32, #tpu.memory_space<vmem>>) attributes {dimension_semantics = [#tpu.dimension_semantics<parallel>, #tpu.dimension_semantics<arbitrary>], iteration_bounds = array<i64: 1, 1>, scalar_prefetch = 0 : i64, scratch_operands = 0 : i64, tpu.core_type = #tpu.core_type<tc>, window_params = [{transform_indices = @transform_0, window_bounds = array<i64: 8, 128>}, {transform_indices = @transform_1, window_bounds = array<i64: 8, 1>}]} {
    %c0_i32 = arith.constant 0 : i32
    %0 = arith.cmpi eq, %arg1, %c0_i32 : i32
    %1 = arith.extui %0 : i1 to i32
    %c0_i32_0 = arith.constant 0 : i32
    %2 = arith.cmpi ne, %1, %c0_i32_0 : i32
    scf.if %2 {
      %cst_8 = arith.constant 0.000000e+00 : f32
      %13 = vector.broadcast %cst_8 : f32 to vector<8x1xf32>
      %c0_9 = arith.constant 0 : index
      %c0_10 = arith.constant 0 : index
      %14 = vector.load %arg3[%c0_9, %c0_10] : memref<8x1xf32, #tpu.memory_space<vmem>>, vector<8x1xf32>
      tpu.vector_store %arg3[%c0_9, %c0_10], %13 {strides = array<i32>} : memref<8x1xf32, #tpu.memory_space<vmem>>, vector<8x1xf32>,
    } else {
    }
    %c0 = arith.constant 0 : index
    %c0_1 = arith.constant 0 : index
    %3 = vector.load %arg2[%c0, %c0_1] : memref<8x128xf32, #tpu.memory_space<vmem>>, vector<8x128xf32>
    %c0_2 = arith.constant 0 : index
    %c0_3 = arith.constant 0 : index
    %4 = vector.load %arg3[%c0_2, %c0_3] : memref<8x1xf32, #tpu.memory_space<vmem>>, vector<8x1xf32>
    %5 = arith.mulf %3, %3 : vector<8x128xf32>
    %cst = arith.constant dense<0.000000e+00> : vector<8xf32>
    %6 = vector.multi_reduction <add>, %5, %cst [1] : vector<8x128xf32> to vector<8xf32>
    %7 = vector.shape_cast %6 : vector<8xf32> to vector<8x1xf32>
    %8 = arith.addf %4, %7 : vector<8x1xf32>
    %c0_4 = arith.constant 0 : index
    %c0_5 = arith.constant 0 : index
    %9 = vector.load %arg3[%c0_4, %c0_5] : memref<8x1xf32, #tpu.memory_space<vmem>>, vector<8x1xf32>
    tpu.vector_store %arg3[%c0_4, %c0_5], %8 {strides = array<i32>} : memref<8x1xf32, #tpu.memory_space<vmem>>, vector<8x1xf32>,
    %c0_i32_6 = arith.constant 0 : i32
    %10 = arith.cmpi eq, %arg1, %c0_i32_6 : i32
    %11 = arith.extui %10 : i1 to i32
    %c0_i32_7 = arith.constant 0 : i32
    %12 = arith.cmpi ne, %11, %c0_i32_7 : i32
    scf.if %12 {
      %c0_8 = arith.constant 0 : index
      %c0_9 = arith.constant 0 : index
      %13 = vector.load %arg3[%c0_8, %c0_9] : memref<8x1xf32, #tpu.memory_space<vmem>>, vector<8x1xf32>
      %14 = math.sqrt %13 : vector<8x1xf32>
      %c0_10 = arith.constant 0 : index
      %c0_11 = arith.constant 0 : index
      %15 = vector.load %arg3[%c0_10, %c0_11] : memref<8x1xf32, #tpu.memory_space<vmem>>, vector<8x1xf32>
      tpu.vector_store %arg3[%c0_10, %c0_11], %14 {strides = array<i32>} : memref<8x1xf32, #tpu.memory_space<vmem>>, vector<8x1xf32>,
    } else {
    }
    return
  }
  func.func @transform_0(%arg0: i32, %arg1: i32) -> (i32, i32) {
    %c0_i32 = arith.constant 0 : i32
    return %arg0, %arg1 : i32, i32
  }
  func.func @transform_1(%arg0: i32, %arg1: i32) -> (i32, i32) {
    %c0_i32 = arith.constant 0 : i32
    %c0_i32_0 = arith.constant 0 : i32
    return %arg0, %c0_i32 : i32, i32
  }
}

</mosaic_0001>

<llo_original>
// kernel: hvsa_forward.3
$region0: #{hvsa_forward.3}
  #allocation0 [shape = 'u32[]', space=smem, size = 0x4, offset = 0x4, fixed_abs, tag = 'smem constant byte address 0x4 - core index']
  #allocation1 [shape = 'u32[144,128]{1,0:T(1,128)}', space=vmem, size = 0x12000, scoped, tag = 'internal scratch']
  %s0 = inlined_call_operand.vmem [shape: f32[8,128], index: 0, kind: input, shape index: {}]
  %s1 = inlined_call_operand.vmem [shape: f32[8,1], index: 1, kind: output, shape index: {}]
  %s2 = sld [smem:[#allocation0]]
  $region22: #{hvsa_forward.3} parent=0
    _
  %s4 = ssub.s32 1, %s2
  %s5 = scalar_select 0, %s4, %s2
  // Predicated region
  $region2: #{hvsa_forward.3} parent=0 // pred_check
    _
  $region3: #{hvsa_forward.3} parent=0 // pred_check_branch
    %7 = sbr.rel (0) target = $region5
  $region4: #{hvsa_forward.3} parent=0 // pred_region
    _
  $region5: #{hvsa_forward.3} parent=0 // pred_fallthru
    _
  %p8 = scmp.eq.s32.totalorder 0, 0
  // Predicated region
  $region6: #{hvsa_forward.3} parent=0 // pred_check
    %p9 = pneg %p8
  $region7: #{hvsa_forward.3} parent=0 // pred_check_branch
    %11 = sbr.rel (%p9) target = $region9
  $region8: #{hvsa_forward.3} parent=0 // pred_region
    %vm12 = vcmask 7168
    %13 = vst.msk [vmem:[%s1] sm:$0xff] %vm12, 0.0
  $region9: #{hvsa_forward.3} parent=0 // pred_fallthru
    _
  %v14 = vld [vmem:[%s0] sm:$0xff]
  %v15 = vld [vmem:[%s1] sm:$0xff]
  %v16 = vmul.f32 %v14, %v14
  %17 = vadd.xlane.f32.xlu0 %v16
  %v18 = vpop.xlane.xlu0 %17
  %v19 = vadd.f32 %v15, %v18
  %vm20 = vcmask 7168
  %21 = vst.msk [vmem:[%s1] sm:$0xff] %vm20, %v19
  // Predicated region
  $region10: #{hvsa_forward.3} parent=0 // pred_check
    %p22 = pneg %p8
  $region11: #{hvsa_forward.3} parent=0 // pred_check_branch
    %24 = sbr.rel (%p22) target = $region13
  $region12: #{hvsa_forward.3} parent=0 // pred_region
    %v25 = vld [vmem:[%s1] sm:$0xff]
    %v26 = vrsqrt.pop %v25
    %v27 = vmul.f32 %v25, %v26
    %vm28 = vcmp.eq.f32.partialorder %v25, inf
    %v29 = vsel %vm28, %v25, %v27
    %vm30 = vcmp.eq.f32.partialorder %v25, 0.0
    %v31 = vand.u32 %v25, 2147483648
    %v32 = vsel %vm30, %v31, %v29
    %33 = vst.msk [vmem:[%s1] sm:$0xff] %vm20, %v32
  $region13: #{hvsa_forward.3} parent=0 // pred_fallthru
    _
  // Predicated region
  $region14: #{hvsa_forward.3} parent=0 // pred_check
    _
  $region15: #{hvsa_forward.3} parent=0 // pred_check_branch
    %35 = sbr.rel (0) target = $region17
  $region16: #{hvsa_forward.3} parent=0 // pred_region
    _
  $region17: #{hvsa_forward.3} parent=0 // pred_fallthru
    _
  // Predicated region
  $region18: #{hvsa_forward.3} parent=0 // pred_check
    _
  $region19: #{hvsa_forward.3} parent=0 // pred_check_branch
    %37 = sbr.rel (0) target = $region21
  $region20: #{hvsa_forward.3} parent=0 // pred_region
    _
  $region21: #{hvsa_forward.3} parent=0 // pred_fallthru
    _

// kernel: hvsa_forward.4
$region0: #{hvsa_forward.4}
  #allocation0 [shape = 'u32[]', space=smem, size = 0x4, offset = 0x4, fixed_abs, tag = 'smem constant byte address 0x4 - core index']
  #allocation1 [shape = 'u32[144,128]{1,0:T(1,128)}', space=vmem, size = 0x12000, scoped, tag = 'internal scratch']
  %s0 = inlined_call_operand.vmem [shape: f32[128,128], index: 0, kind: input, shape index: {}]
  %s1 = inlined_call_operand.vmem [shape: f32[128,1], index: 1, kind: output, shape index: {}]
  %s2 = sld [smem:[#allocation0]]
  $region22: #{hvsa_forward.4} parent=0
    _
  %s4 = ssub.s32 1, %s2
  %s5 = scalar_select 0, %s4, %s2
  // Predicated region
  $region2: #{hvsa_forward.4} parent=0 // pred_check
    _
  $region3: #{hvsa_forward.4} parent=0 // pred_check_branch
    %7 = sbr.rel (0) target = $region5
  $region4: #{hvsa_forward.4} parent=0 // pred_region
    _
  $region5: #{hvsa_forward.4} parent=0 // pred_fallthru
    _
  %p8 = scmp.eq.s32.totalorder 0, 0
  // Predicated region
  $region6: #{hvsa_forward.4} parent=0 // pred_check
    %p9 = pneg %p8
  $region7: #{hvsa_forward.4} parent=0 // pred_check_branch
    %11 = sbr.rel (%p9) target = $region9
  $region8: #{hvsa_forward.4} parent=0 // pred_region
    %vm12 = vcmask 7168
    %13 = vst.msk [vmem:[%s1] sm:$0xff] %vm12, 0.0
    %14 = vst.msk [vmem:[%s1 + $0x8] sm:$0xff] %vm12, 0.0
    %15 = vst.msk [vmem:[%s1 + $0x10] sm:$0xff] %vm12, 0.0
    %16 = vst.msk [vmem:[%s1 + $0x18] sm:$0xff] %vm12, 0.0
    %17 = vst.msk [vmem:[%s1 + $0x20] sm:$0xff] %vm12, 0.0
    %18 = vst.msk [vmem:[%s1 + $0x28] sm:$0xff] %vm12, 0.0
    %19 = vst.msk [vmem:[%s1 + $0x30] sm:$0xff] %vm12, 0.0
    %20 = vst.msk [vmem:[%s1 + $0x38] sm:$0xff] %vm12, 0.0
    %21 = vst.msk [vmem:[%s1 + $0x40] sm:$0xff] %vm12, 0.0
    %22 = vst.msk [vmem:[%s1 + $0x48] sm:$0xff] %vm12, 0.0
    %23 = vst.msk [vmem:[%s1 + $0x50] sm:$0xff] %vm12, 0.0
    %24 = vst.msk [vmem:[%s1 + $0x58] sm:$0xff] %vm12, 0.0
    %25 = vst.msk [vmem:[%s1 + $0x60] sm:$0xff] %vm12, 0.0
    %26 = vst.msk [vmem:[%s1 + $0x68] sm:$0xff] %vm12, 0.0
    %27 = vst.msk [vmem:[%s1 + $0x70] sm:$0xff] %vm12, 0.0
    %28 = vst.msk [vmem:[%s1 + $0x78] sm:$0xff] %vm12, 0.0
  $region9: #{hvsa_forward.4} parent=0 // pred_fallthru
    _
  %v29 = vld [vmem:[%s0] sm:$0xff]
  %v30 = vld [vmem:[%s0 + $0x8] sm:$0xff]
  %v31 = vld [vmem:[%s0 + $0x10] sm:$0xff]
  %v32 = vld [vmem:[%s0 + $0x18] sm:$0xff]
  %v33 = vld [vmem:[%s0 + $0x20] sm:$0xff]
  %v34 = vld [vmem:[%s0 + $0x28] sm:$0xff]
  %v35 = vld [vmem:[%s0 + $0x30] sm:$0xff]
  %v36 = vld [vmem:[%s0 + $0x38] sm:$0xff]
  %v37 = vld [vmem:[%s0 + $0x40] sm:$0xff]
  %v38 = vld [vmem:[%s0 + $0x48] sm:$0xff]
  %v39 = vld [vmem:[%s0 + $0x50] sm:$0xff]
  %v40 = vld [vmem:[%s0 + $0x58] sm:$0xff]
  %v41 = vld [vmem:[%s0 + $0x60] sm:$0xff]
  %v42 = vld [vmem:[%s0 + $0x68] sm:$0xff]
  %v43 = vld [vmem:[%s0 + $0x70] sm:$0xff]
  %v44 = vld [vmem:[%s0 + $0x78] sm:$0xff]
  %v45 = vld [vmem:[%s1] sm:$0xff]
  %v46 = vld [vmem:[%s1 + $0x8] sm:$0xff]
  %v47 = vld [vmem:[%s1 + $0x10] sm:$0xff]
  %v48 = vld [vmem:[%s1 + $0x18] sm:$0xff]
  %v49 = vld [vmem:[%s1 + $0x20] sm:$0xff]
  %v50 = vld [vmem:[%s1 + $0x28] sm:$0xff]
  %v51 = vld [vmem:[%s1 + $0x30] sm:$0xff]
  %v52 = vld [vmem:[%s1 + $0x38] sm:$0xff]
  %v53 = vld [vmem:[%s1 + $0x40] sm:$0xff]
  %v54 = vld [vmem:[%s1 + $0x48] sm:$0xff]
  %v55 = vld [vmem:[%s1 + $0x50] sm:$0xff]
  %v56 = vld [vmem:[%s1 + $0x58] sm:$0xff]
  %v57 = vld [vmem:[%s1 + $0x60] sm:$0xff]
  %v58 = vld [vmem:[%s1 + $0x68] sm:$0xff]
  %v59 = vld [vmem:[%s1 + $0x70] sm:$0xff]
  %v60 = vld [vmem:[%s1 + $0x78] sm:$0xff]
  %v61 = vmul.f32 %v29, %v29
  %v62 = vmul.f32 %v30, %v30
  %v63 = vmul.f32 %v31, %v31
  %v64 = vmul.f32 %v32, %v32
  %v65 = vmul.f32 %v33, %v33
  %v66 = vmul.f32 %v34, %v34
  %v67 = vmul.f32 %v35, %v35
  %v68 = vmul.f32 %v36, %v36
  %v69 = vmul.f32 %v37, %v37
  %v70 = vmul.f32 %v38, %v38
  %v71 = vmul.f32 %v39, %v39
  %v72 = vmul.f32 %v40, %v40
  %v73 = vmul.f32 %v41, %v41
  %v74 = vmul.f32 %v42, %v42
  %v75 = vmul.f32 %v43, %v43
  %v76 = vmul.f32 %v44, %v44
  %77 = vadd.xlane.f32.xlu0 %v61
  %v78 = vpop.xlane.xlu0 %77
  %79 = vadd.xlane.f32.xlu0 %v62
  %v80 = vpop.xlane.xlu0 %79
  %81 = vadd.xlane.f32.xlu0 %v63
  %v82 = vpop.xlane.xlu0 %81
  %83 = vadd.xlane.f32.xlu0 %v64
  %v84 = vpop.xlane.xlu0 %83
  %85 = vadd.xlane.f32.xlu0 %v65
  %v86 = vpop.xlane.xlu0 %85
  %87 = vadd.xlane.f32.xlu0 %v66
  %v88 = vpop.xlane.xlu0 %87
  %89 = vadd.xlane.f32.xlu0 %v67
  %v90 = vpop.xlane.xlu0 %89
  %91 = vadd.xlane.f32.xlu0 %v68
  %v92 = vpop.xlane.xlu0 %91
  %93 = vadd.xlane.f32.xlu0 %v69
  %v94 = vpop.xlane.xlu0 %93
  %95 = vadd.xlane.f32.xlu0 %v70
  %v96 = vpop.xlane.xlu0 %95
  %97 = vadd.xlane.f32.xlu0 %v71
  %v98 = vpop.xlane.xlu0 %97
  %99 = vadd.xlane.f32.xlu0 %v72
  %v100 = vpop.xlane.xlu0 %99
  %101 = vadd.xlane.f32.xlu0 %v73
  %v102 = vpop.xlane.xlu0 %101
  %103 = vadd.xlane.f32.xlu0 %v74
  %v104 = vpop.xlane.xlu0 %103
  %105 = vadd.xlane.f32.xlu0 %v75
  %v106 = vpop.xlane.xlu0 %105
  %107 = vadd.xlane.f32.xlu0 %v76
  %v108 = vpop.xlane.xlu0 %107
  %v109 = vadd.f32 %v45, %v78
  %v110 = vadd.f32 %v46, %v80
  %v111 = vadd.f32 %v47, %v82
  %v112 = vadd.f32 %v48, %v84
  %v113 = vadd.f32 %v49, %v86
  %v114 = vadd.f32 %v50, %v88
  %v115 = vadd.f32 %v51, %v90
  %v116 = vadd.f32 %v52, %v92
  %v117 = vadd.f32 %v53, %v94
  %v118 = vadd.f32 %v54, %v96
  %v119 = vadd.f32 %v55, %v98
  %v120 = vadd.f32 %v56, %v100
  %v121 = vadd.f32 %v57, %v102
  %v122 = vadd.f32 %v58, %v104
  %v123 = vadd.f32 %v59, %v106
  %v124 = vadd.f32 %v60, %v108
  %vm125 = vcmask 7168
  %126 = vst.msk [vmem:[%s1] sm:$0xff] %vm125, %v109
  %127 = vst.msk [vmem:[%s1 + $0x8] sm:$0xff] %vm125, %v110
  %128 = vst.msk [vmem:[%s1 + $0x10] sm:$0xff] %vm125, %v111
  %129 = vst.msk [vmem:[%s1 + $0x18] sm:$0xff] %vm125, %v112
  %130 = vst.msk [vmem:[%s1 + $0x20] sm:$0xff] %vm125, %v113
  %131 = vst.msk [vmem:[%s1 + $0x28] sm:$0xff] %vm125, %v114
  %132 = vst.msk [vmem:[%s1 + $0x30] sm:$0xff] %vm125, %v115
  %133 = vst.msk [vmem:[%s1 + $0x38] sm:$0xff] %vm125, %v116
  %134 = vst.msk [vmem:[%s1 + $0x40] sm:$0xff] %vm125, %v117
  %135 = vst.msk [vmem:[%s1 + $0x48] sm:$0xff] %vm125, %v118
  %136 = vst.msk [vmem:[%s1 + $0x50] sm:$0xff] %vm125, %v119
  %137 = vst.msk [vmem:[%s1 + $0x58] sm:$0xff] %vm125, %v120
  %138 = vst.msk [vmem:[%s1 + $0x60] sm:$0xff] %vm125, %v121
  %139 = vst.msk [vmem:[%s1 + $0x68] sm:$0xff] %vm125, %v122
  %140 = vst.msk [vmem:[%s1 + $0x70] sm:$0xff] %vm125, %v123
  %141 = vst.msk [vmem:[%s1 + $0x78] sm:$0xff] %vm125, %v124
  // Predicated region
  $region10: #{hvsa_forward.4} parent=0 // pred_check
    %p142 = pneg %p8
  $region11: #{hvsa_forward.4} parent=0 // pred_check_branch
    %144 = sbr.rel (%p142) target = $region13
  $region12: #{hvsa_forward.4} parent=0 // pred_region
    %v145 = vld [vmem:[%s1] sm:$0xff]
    %v146 = vld [vmem:[%s1 + $0x8] sm:$0xff]
    %v147 = vld [vmem:[%s1 + $0x10] sm:$0xff]
    %v148 = vld [vmem:[%s1 + $0x18] sm:$0xff]
    %v149 = vld [vmem:[%s1 + $0x20] sm:$0xff]
    %v150 = vld [vmem:[%s1 + $0x28] sm:$0xff]
    %v151 = vld [vmem:[%s1 + $0x30] sm:$0xff]
    %v152 = vld [vmem:[%s1 + $0x38] sm:$0xff]
    %v153 = vld [vmem:[%s1 + $0x40] sm:$0xff]
    %v154 = vld [vmem:[%s1 + $0x48] sm:$0xff]
    %v155 = vld [vmem:[%s1 + $0x50] sm:$0xff]
    %v156 = vld [vmem:[%s1 + $0x58] sm:$0xff]
    %v157 = vld [vmem:[%s1 + $0x60] sm:$0xff]
    %v158 = vld [vmem:[%s1 + $0x68] sm:$0xff]
    %v159 = vld [vmem:[%s1 + $0x70] sm:$0xff]
    %v160 = vld [vmem:[%s1 + $0x78] sm:$0xff]
    %v161 = vrsqrt.pop %v145
    %v162 = vmul.f32 %v145, %v161
    %vm163 = vcmp.eq.f32.partialorder %v145, inf
    %v164 = vsel %vm163, %v145, %v162
    %vm165 = vcmp.eq.f32.partialorder %v145, 0.0
    %v166 = vand.u32 %v145, 2147483648
    %v167 = vsel %vm165, %v166, %v164
    %v168 = vrsqrt.pop %v146
    %v169 = vmul.f32 %v146, %v168
    %vm170 = vcmp.eq.f32.partialorder %v146, inf
    %v171 = vsel %vm170, %v146, %v169
    %vm172 = vcmp.eq.f32.partialorder %v146, 0.0
    %v173 = vand.u32 %v146, 2147483648
    %v174 = vsel %vm172, %v173, %v171
    %v175 = vrsqrt.pop %v147
    %v176 = vmul.f32 %v147, %v175
    %vm177 = vcmp.eq.f32.partialorder %v147, inf
    %v178 = vsel %vm177, %v147, %v176
    %vm179 = vcmp.eq.f32.partialorder %v147, 0.0
    %v180 = vand.u32 %v147, 2147483648
    %v181 = vsel %vm179, %v180, %v178
    %v182 = vrsqrt.pop %v148
    %v183 = vmul.f32 %v148, %v182
    %vm184 = vcmp.eq.f32.partialorder %v148, inf
    %v185 = vsel %vm184, %v148, %v183
    %vm186 = vcmp.eq.f32.partialorder %v148, 0.0
    %v187 = vand.u32 %v148, 2147483648
    %v188 = vsel %vm186, %v187, %v185
    %v189 = vrsqrt.pop %v149
    %v190 = vmul.f32 %v149, %v189
    %vm191 = vcmp.eq.f32.partialorder %v149, inf
    %v192 = vsel %vm191, %v149, %v190
    %vm193 = vcmp.eq.f32.partialorder %v149, 0.0
    %v194 = vand.u32 %v149, 2147483648
    %v195 = vsel %vm193, %v194, %v192
    %v196 = vrsqrt.pop %v150
    %v197 = vmul.f32 %v150, %v196
    %vm198 = vcmp.eq.f32.partialorder %v150, inf
    %v199 = vsel %vm198, %v150, %v197
    %vm200 = vcmp.eq.f32.partialorder %v150, 0.0
    %v201 = vand.u32 %v150, 2147483648
    %v202 = vsel %vm200, %v201, %v199
    %v203 = vrsqrt.pop %v151
    %v204 = vmul.f32 %v151, %v203
    %vm205 = vcmp.eq.f32.partialorder %v151, inf
    %v206 = vsel %vm205, %v151, %v204
    %vm207 = vcmp.eq.f32.partialorder %v151, 0.0
    %v208 = vand.u32 %v151, 2147483648
    %v209 = vsel %vm207, %v208, %v206
    %v210 = vrsqrt.pop %v152
    %v211 = vmul.f32 %v152, %v210
    %vm212 = vcmp.eq.f32.partialorder %v152, inf
    %v213 = vsel %vm212, %v152, %v211
    %vm214 = vcmp.eq.f32.partialorder %v152, 0.0
    %v215 = vand.u32 %v152, 2147483648
    %v216 = vsel %vm214, %v215, %v213
    %v217 = vrsqrt.pop %v153
    %v218 = vmul.f32 %v153, %v217
    %vm219 = vcmp.eq.f32.partialorder %v153, inf
    %v220 = vsel %vm219, %v153, %v218
    %vm221 = vcmp.eq.f32.partialorder %v153, 0.0
    %v222 = vand.u32 %v153, 2147483648
    %v223 = vsel %vm221, %v222, %v220
    %v224 = vrsqrt.pop %v154
    %v225 = vmul.f32 %v154, %v224
    %vm226 = vcmp.eq.f32.partialorder %v154, inf
    %v227 = vsel %vm226, %v154, %v225
    %vm228 = vcmp.eq.f32.partialorder %v154, 0.0
    %v229 = vand.u32 %v154, 2147483648
    %v230 = vsel %vm228, %v229, %v227
    %v231 = vrsqrt.pop %v155
    %v232 = vmul.f32 %v155, %v231
    %vm233 = vcmp.eq.f32.partialorder %v155, inf
    %v234 = vsel %vm233, %v155, %v232
    %vm235 = vcmp.eq.f32.partialorder %v155, 0.0
    %v236 = vand.u32 %v155, 2147483648
    %v237 = vsel %vm235, %v236, %v234
    %v238 = vrsqrt.pop %v156
    %v239 = vmul.f32 %v156, %v238
    %vm240 = vcmp.eq.f32.partialorder %v156, inf
    %v241 = vsel %vm240, %v156, %v239
    %vm242 = vcmp.eq.f32.partialorder %v156, 0.0
    %v243 = vand.u32 %v156, 2147483648
    %v244 = vsel %vm242, %v243, %v241
    %v245 = vrsqrt.pop %v157
    %v246 = vmul.f32 %v157, %v245
    %vm247 = vcmp.eq.f32.partialorder %v157, inf
    %v248 = vsel %vm247, %v157, %v246
    %vm249 = vcmp.eq.f32.partialorder %v157, 0.0
    %v250 = vand.u32 %v157, 2147483648
    %v251 = vsel %vm249, %v250, %v248
    %v252 = vrsqrt.pop %v158
    %v253 = vmul.f32 %v158, %v252
    %vm254 = vcmp.eq.f32.partialorder %v158, inf
    %v255 = vsel %vm254, %v158, %v253
    %vm256 = vcmp.eq.f32.partialorder %v158, 0.0
    %v257 = vand.u32 %v158, 2147483648
    %v258 = vsel %vm256, %v257, %v255
    %v259 = vrsqrt.pop %v159
    %v260 = vmul.f32 %v159, %v259
    %vm261 = vcmp.eq.f32.partialorder %v159, inf
    %v262 = vsel %vm261, %v159, %v260
    %vm263 = vcmp.eq.f32.partialorder %v159, 0.0
    %v264 = vand.u32 %v159, 2147483648
    %v265 = vsel %vm263, %v264, %v262
    %v266 = vrsqrt.pop %v160
    %v267 = vmul.f32 %v160, %v266
    %vm268 = vcmp.eq.f32.partialorder %v160, inf
    %v269 = vsel %vm268, %v160, %v267
    %vm270 = vcmp.eq.f32.partialorder %v160, 0.0
    %v271 = vand.u32 %v160, 2147483648
    %v272 = vsel %vm270, %v271, %v269
    %273 = vst.msk [vmem:[%s1] sm:$0xff] %vm125, %v167
    %274 = vst.msk [vmem:[%s1 + $0x8] sm:$0xff] %vm125, %v174
    %275 = vst.msk [vmem:[%s1 + $0x10] sm:$0xff] %vm125, %v181
    %276 = vst.msk [vmem:[%s1 + $0x18] sm:$0xff] %vm125, %v188
    %277 = vst.msk [vmem:[%s1 + $0x20] sm:$0xff] %vm125, %v195
    %278 = vst.msk [vmem:[%s1 + $0x28] sm:$0xff] %vm125, %v202
    %279 = vst.msk [vmem:[%s1 + $0x30] sm:$0xff] %vm125, %v209
    %280 = vst.msk [vmem:[%s1 + $0x38] sm:$0xff] %vm125, %v216
    %281 = vst.msk [vmem:[%s1 + $0x40] sm:$0xff] %vm125, %v223
    %282 = vst.msk [vmem:[%s1 + $0x48] sm:$0xff] %vm125, %v230
    %283 = vst.msk [vmem:[%s1 + $0x50] sm:$0xff] %vm125, %v237
    %284 = vst.msk [vmem:[%s1 + $0x58] sm:$0xff] %vm125, %v244
    %285 = vst.msk [vmem:[%s1 + $0x60] sm:$0xff] %vm125, %v251
    %286 = vst.msk [vmem:[%s1 + $0x68] sm:$0xff] %vm125, %v258
    %287 = vst.msk [vmem:[%s1 + $0x70] sm:$0xff] %vm125, %v265
    %288 = vst.msk [vmem:[%s1 + $0x78] sm:$0xff] %vm125, %v272
  $region13: #{hvsa_forward.4} parent=0 // pred_fallthru
    _
  // Predicated region
  $region14: #{hvsa_forward.4} parent=0 // pred_check
    _
  $region15: #{hvsa_forward.4} parent=0 // pred_check_branch
    %290 = sbr.rel (0) target = $region17
  $region16: #{hvsa_forward.4} parent=0 // pred_region
    _
  $region17: #{hvsa_forward.4} parent=0 // pred_fallthru
    _
  // Predicated region
  $region18: #{hvsa_forward.4} parent=0 // pred_check
    _
  $region19: #{hvsa_forward.4} parent=0 // pred_check_branch
    %292 = sbr.rel (0) target = $region21
  $region20: #{hvsa_forward.4} parent=0 // pred_region
    _
  $region21: #{hvsa_forward.4} parent=0 // pred_fallthru
    _

// kernel: hvsa_forward.5
$region0: #{hvsa_forward.5}
  #allocation0 [shape = 'u32[]', space=smem, size = 0x4, offset = 0x4, fixed_abs, tag = 'smem constant byte address 0x4 - core index']
  #allocation1 [shape = 'u32[144,128]{1,0:T(1,128)}', space=vmem, size = 0x12000, scoped, tag = 'internal scratch']
  %s0 = inlined_call_operand.vmem [shape: f32[8,128], index: 0, kind: input, shape index: {}]
  %s1 = inlined_call_operand.vmem [shape: f32[128,128], index: 1, kind: input, shape index: {}]
  %s2 = inlined_call_operand.vmem [shape: f32[8,1], index: 2, kind: input, shape index: {}]
  %s3 = inlined_call_operand.vmem [shape: f32[1,128], index: 3, kind: input, shape index: {}]
  %s4 = inlined_call_operand.hbm [shape: f32[8,128], index: 4, kind: output, shape index: {}]
  %s5 = sld [smem:[#allocation0]]
  $region34: #{hvsa_forward.5} parent=0
    _
  %s7 = ssub.s32 1, %s5
  %s8 = scalar_select 0, %s7, %s5
  $region1: #{hvsa_forward.5} parent=0
    #allocation2 [shape = 'u8[4096]{0}', space=vmem, size = 0x1000, scoped, tag = 'output window, operand 0, single buffered']
    #allocation3 [shape = 's32[1]{0}', space=sflag, size = 0x4, scoped, tag = 'scoped memory for hvsa_forward.5']
    %9 = vsyncpa [#allocation3], 0
    // Predicated region
    $region2: #{hvsa_forward.5} parent=1 // pred_check
      _
    $region3: #{hvsa_forward.5} parent=1 // pred_check_branch
      %11 = sbr.rel (0) target = $region5
    $region4: #{hvsa_forward.5} parent=1 // pred_region
      _
    $region5: #{hvsa_forward.5} parent=1 // pred_fallthru
      _
    // Predicated region
    $region6: #{hvsa_forward.5} parent=1 // pred_check
      _
    $region7: #{hvsa_forward.5} parent=1 // pred_check_branch
      %13 = sbr.rel (0) target = $region9
    $region8: #{hvsa_forward.5} parent=1 // pred_region
      _
    $region9: #{hvsa_forward.5} parent=1 // pred_fallthru
      _
    // Predicated region
    $region10: #{hvsa_forward.5} parent=1 // pred_check
      _
    $region11: #{hvsa_forward.5} parent=1 // pred_check_branch
      %15 = sbr.rel (0) target = $region13
    $region12: #{hvsa_forward.5} parent=1 // pred_region
      _
    $region13: #{hvsa_forward.5} parent=1 // pred_fallthru
      _
    // Predicated region
    $region14: #{hvsa_forward.5} parent=1 // pred_check
      _
    $region15: #{hvsa_forward.5} parent=1 // pred_check_branch
      %17 = sbr.rel (0) target = $region17
    $region16: #{hvsa_forward.5} parent=1 // pred_region
      _
    $region17: #{hvsa_forward.5} parent=1 // pred_fallthru
      _
    %p18 = scmp.eq.s32.totalorder 0, 0
    // Predicated region
    $region18: #{hvsa_forward.5} parent=1 // pred_check
      %p19 = pneg %p18
    $region19: #{hvsa_forward.5} parent=1 // pred_check_branch
      %21 = sbr.rel (%p19) target = $region21
    $region20: #{hvsa_forward.5} parent=1 // pred_region
      %22 = vst [vmem:[#allocation2] sm:$0xff] 0.0
    $region21: #{hvsa_forward.5} parent=1 // pred_fallthru
      _
    %v23 = vld [vmem:[#allocation2] sm:$0xff]
    %v24 = vld [vmem:[%s0] sm:$0xff]
    %v25 = vld [vmem:[%s1] sm:$0xff]
    %v26 = vld [vmem:[%s1 + $0x8] sm:$0xff]
    %v27 = vld [vmem:[%s1 + $0x10] sm:$0xff]
    %v28 = vld [vmem:[%s1 + $0x18] sm:$0xff]
    %v29 = vld [vmem:[%s1 + $0x20] sm:$0xff]
    %v30 = vld [vmem:[%s1 + $0x28] sm:$0xff]
    %v31 = vld [vmem:[%s1 + $0x30] sm:$0xff]
    %v32 = vld [vmem:[%s1 + $0x38] sm:$0xff]
    %v33 = vld [vmem:[%s1 + $0x40] sm:$0xff]
    %v34 = vld [vmem:[%s1 + $0x48] sm:$0xff]
    %v35 = vld [vmem:[%s1 + $0x50] sm:$0xff]
    %v36 = vld [vmem:[%s1 + $0x58] sm:$0xff]
    %v37 = vld [vmem:[%s1 + $0x60] sm:$0xff]
    %v38 = vld [vmem:[%s1 + $0x68] sm:$0xff]
    %v39 = vld [vmem:[%s1 + $0x70] sm:$0xff]
    %v40 = vld [vmem:[%s1 + $0x78] sm:$0xff]
    %41 = vmatprep.subr.mxu0 0.0
    %42 = vmatpush1.xpose.msra.mxu0 %v40
    %43 = vmatprep.subr.mxu0 0.0
    %44 = vmatpush1.xpose.msra.mxu0 %v39
    %45 = vmatprep.subr.mxu0 0.0
    %46 = vmatpush1.xpose.msra.mxu0 %v38
    %47 = vmatprep.subr.mxu0 0.0
    %48 = vmatpush1.xpose.msra.mxu0 %v37
    %49 = vmatprep.subr.mxu0 0.0
    %50 = vmatpush1.xpose.msra.mxu0 %v36
    %51 = vmatprep.subr.mxu0 0.0
    %52 = vmatpush1.xpose.msra.mxu0 %v35
    %53 = vmatprep.subr.mxu0 0.0
    %54 = vmatpush1.xpose.msra.mxu0 %v34
    %55 = vmatprep.subr.mxu0 0.0
    %56 = vmatpush1.xpose.msra.mxu0 %v33
    %57 = vmatprep.subr.mxu0 0.0
    %58 = vmatpush1.xpose.msra.mxu0 %v32
    %59 = vmatprep.subr.mxu0 0.0
    %60 = vmatpush1.xpose.msra.mxu0 %v31
    %61 = vmatprep.subr.mxu0 0.0
    %62 = vmatpush1.xpose.msra.mxu0 %v30
    %63 = vmatprep.subr.mxu0 0.0
    %64 = vmatpush1.xpose.msra.mxu0 %v29
    %65 = vmatprep.subr.mxu0 0.0
    %66 = vmatpush1.xpose.msra.mxu0 %v28
    %67 = vmatprep.subr.mxu0 0.0
    %68 = vmatpush1.xpose.msra.mxu0 %v27
    %69 = vmatprep.subr.mxu0 0.0
    %70 = vmatpush1.xpose.msra.mxu0 %v26
    %71 = vmatprep.subr.mxu0 0.0
    %72 = vmatpush1.xpose.msra.mxu0 %v25
    %73 = vmatprep.subr.mxu0 0.0
    %74 = vmatpush2.xpose.msra.mxu0 0.0
    %75 = vmatprep.subr.mxu0 0.0
    %76 = vmatpush2.xpose.msra.mxu0 0.0
    %77 = vmatprep.subr.mxu0 0.0
    %78 = vmatpush2.xpose.msra.mxu0 0.0
    %79 = vmatprep.subr.mxu0 0.0
    %80 = vmatpush2.xpose.msra.mxu0 0.0
    %81 = vmatprep.subr.mxu0 0.0
    %82 = vmatpush2.xpose.msra.mxu0 0.0
    %83 = vmatprep.subr.mxu0 0.0
    %84 = vmatpush2.xpose.msra.mxu0 0.0
    %85 = vmatprep.subr.mxu0 0.0
    %86 = vmatpush2.xpose.msra.mxu0 0.0
    %87 = vmatprep.subr.mxu0 0.0
    %88 = vmatpush2.xpose.msra.mxu0 0.0
    %89 = vmatprep.subr.mxu0 0.0
    %90 = vmatpush2.xpose.msra.mxu0 0.0
    %91 = vmatprep.subr.mxu0 0.0
    %92 = vmatpush2.xpose.msra.mxu0 0.0
    %93 = vmatprep.subr.mxu0 0.0
    %94 = vmatpush2.xpose.msra.mxu0 0.0
    %95 = vmatprep.subr.mxu0 0.0
    %96 = vmatpush2.xpose.msra.mxu0 0.0
    %97 = vmatprep.subr.mxu0 0.0
    %98 = vmatpush2.xpose.msra.mxu0 0.0
    %99 = vmatprep.subr.mxu0 0.0
    %100 = vmatpush2.xpose.msra.mxu0 0.0
    %101 = vmatprep.subr.mxu0 0.0
    %102 = vmatpush2.xpose.msra.mxu0 0.0
    %103 = vmatprep.subr.mxu0 0.0
    %104 = vmatpush2.xpose.msra.mxu0 0.0
    %105 = vmatprep.mubr.f32.mxu0 0.0
    %106 = vmatmul.mubr.f32.gmra.mxu0 %v24
    %v107 = vpop.f32.mrf.mxu0
    %v108 = vadd.f32 0.0, %v107
    %v109 = vpop.f32.mrf.mxu0
    %110 = vdwg.mxu0
    %v111 = vadd.f32 %v23, %v108
    %112 = vst [vmem:[#allocation2] sm:$0xff] %v111
    // Predicated region
    $region22: #{hvsa_forward.5} parent=1 // pred_check
      %p113 = pneg %p18
    $region23: #{hvsa_forward.5} parent=1 // pred_check_branch
      %115 = sbr.rel (%p113) target = $region25
    $region24: #{hvsa_forward.5} parent=1 // pred_region
      %v116 = vld [vmem:[%s2] sm:$0xff]
      %v117 = vld [vmem:[%s3] sm:$0x1]
      %119 = vset.pattern.permute.xlu0 0
      %120 = vperm.xlu0 %119, %v116
      %v121 = vpop.permute.xlu0 %120
      %v124 = vlaneseq
      %v125 = vshrl.u32 %v124, 7
      %v126 = vsub.s32 0, %v125
      %v127 = vrot.slane %v117, %v126
      %v129 = vmul.f32 %v121, %v127
      %v130 = vmax.f32 %v129, 1e-08
      %v131 = vrcp.pop %v130
      %v132 = vmul.f32 %v130, %v131
      %v133 = vsub.f32 2.0, %v132
      %v134 = vmul.f32 %v131, %v133
      %v135 = vld [vmem:[#allocation2] sm:$0xff]
      %v136 = vmul.f32 %v135, %v134
      %137 = vst [vmem:[#allocation2] sm:$0xff] %v136
    $region25: #{hvsa_forward.5} parent=1 // pred_fallthru
      _
    // Predicated region
    $region26: #{hvsa_forward.5} parent=1 // pred_check
      _
    $region27: #{hvsa_forward.5} parent=1 // pred_check_branch
      %139 = sbr.rel (0) target = $region29
    $region28: #{hvsa_forward.5} parent=1 // pred_region
      %s141 = ssub.s32 128, 128
      %142 = vsyncadd [#allocation3], %s141
      %s144 = sshll.u32 [#allocation2], 4
      %s145 = int_to_ptr.vmem [resolvable:$true] %s144
      %147 = dma.vmem_to_hbm [thread:$0]  %s145, 128, %s4, [#allocation3]
    $region29: #{hvsa_forward.5} parent=1 // pred_fallthru
      _
    // Predicated region
    $region30: #{hvsa_forward.5} parent=1 // pred_check
      _
    $region31: #{hvsa_forward.5} parent=1 // pred_check_branch
      %149 = sbr.rel (0) target = $region33
    $region32: #{hvsa_forward.5} parent=1 // pred_region
      %150 = dma.done [#allocation3], 128
    $region33: #{hvsa_forward.5} parent=1 // pred_fallthru
      _
    %151 = vsyncpa [#allocation3], 1

</llo_original>
